<compile_context>
chip_gen: v5e
topology: v5e:2x2
jax: 0.10.0
libtpu: 0.0.40
codegen_flags: <defaults>
</compile_context>

<pallas_src>
import jax
import jax.numpy as jnp
from jax.experimental import pallas as pl
from jax.experimental.pallas import tpu as pltpu


def _round_up(x, m):
    return ((x + m - 1) // m) * m


def _sublane_min(dtype):
    # Second-to-last block dim minimum by element width (packing minimum).
    return {4: 8, 2: 16, 1: 32}.get(jnp.dtype(dtype).itemsize, 8)


def _vmem_capacity_bytes():
    try:
        info = pltpu.get_tpu_info()
        cap = getattr(info, "vmem_capacity_bytes", None)
        if cap:
            return int(cap)
    except Exception:
        pass
    return 64 * 1024 * 1024  # conservative fallback (v7x per-TC VMEM)


# --------------------------------------------------------------------------
# Kernel bodies
# --------------------------------------------------------------------------

def mlp_kernel_resident(x_ref, w1_ref, b1_ref, w2_ref, b2_ref, o_ref):
    """Whole W1/W2 resident in VMEM; one grid axis over row tiles."""
    h = jnp.dot(x_ref[...], w1_ref[...], preferred_element_type=jnp.float32)
    h = jnp.maximum(h + b1_ref[...], 0.0)
    y = jnp.dot(h.astype(w2_ref.dtype), w2_ref[...],
                preferred_element_type=jnp.float32)
    o_ref[...] = (y + b2_ref[...]).astype(o_ref.dtype)


def mlp_kernel_streamed_f32acc(x_ref, w1_ref, b1_ref, w2_ref, b2_ref, o_ref):
    """Streamed hidden reduction, accumulating directly into the f32 output."""
    k = pl.program_id(1)

    @pl.when(k == 0)
    def _():
        o_ref[...] = jnp.zeros_like(o_ref)

    h = jnp.dot(x_ref[...], w1_ref[...], preferred_element_type=jnp.float32)
    h = jnp.maximum(h + b1_ref[...], 0.0)
    o_ref[...] += jnp.dot(h.astype(w2_ref.dtype), w2_ref[...],
                          preferred_element_type=jnp.float32)

    @pl.when(k == pl.num_programs(1) - 1)
    def _():
        o_ref[...] += b2_ref[...]


def mlp_kernel_streamed_scratch(x_ref, w1_ref, b1_ref, w2_ref, b2_ref, o_ref,
                                acc_ref):
    """Streamed hidden reduction with an f32 scratch accumulator (non-f32 out)."""
    k = pl.program_id(1)

    @pl.when(k == 0)
    def _():
        acc_ref[...] = jnp.zeros_like(acc_ref)

    h = jnp.dot(x_ref[...], w1_ref[...], preferred_element_type=jnp.float32)
    h = jnp.maximum(h + b1_ref[...], 0.0)
    acc_ref[...] += jnp.dot(h.astype(w2_ref.dtype), w2_ref[...],
                            preferred_element_type=jnp.float32)

    @pl.when(k == pl.num_programs(1) - 1)
    def _():
        o_ref[...] = (acc_ref[...] + b2_ref[...]).astype(o_ref.dtype)


# --------------------------------------------------------------------------
# Host-side wrappers
# --------------------------------------------------------------------------

def prepare_mlp_params(w1, b1, w2, b2, *, compute_dtype=None):
    """One-time weight padding / casting (hoisted out of the per-call path).

    w1: (d_in, H), b1: (H,), w2: (H, d_out), b2: (d_out,).
    Matmul operands are cast to `compute_dtype` (e.g. bf16 for 2-4x MXU rate);
    biases stay f32 since they're added to the f32 accumulator.
    """
    d_in, hidden = w1.shape
    hidden2, d_out = w2.shape
    assert hidden == hidden2 and b1.shape == (hidden,) and b2.shape == (d_out,)
    cd = jnp.dtype(compute_dtype) if compute_dtype is not None else jnp.dtype(w1.dtype)

    d_in_p = _round_up(d_in, 128)
    hidden_p = _round_up(hidden, 128)
    d_out_p = _round_up(d_out, 128)

    w1_p = jnp.pad(w1.astype(cd), ((0, d_in_p - d_in), (0, hidden_p - hidden)))
    b1_p = jnp.pad(b1.astype(jnp.float32), (0, hidden_p - hidden)).reshape(1, hidden_p)
    w2_p = jnp.pad(w2.astype(cd), ((0, hidden_p - hidden), (0, d_out_p - d_out)))
    b2_p = jnp.pad(b2.astype(jnp.float32), (0, d_out_p - d_out)).reshape(1, d_out_p)

    return {"w1": w1_p, "b1": b1_p, "w2": w2_p, "b2": b2_p,
            "d_in": d_in, "hidden": hidden, "d_out": d_out,
            "compute_dtype": cd}


def mlp_forward(x, params, *, block_rows=256, block_hidden=512,
                force_streamed=False):
    """x: (B, d_in) -> (B, d_out).  Uses pre-padded params from prepare_mlp_params."""
    w1_p, b1_p = params["w1"], params["b1"]
    w2_p, b2_p = params["w2"], params["b2"]
    d_in, hidden, d_out = params["d_in"], params["hidden"], params["d_out"]
    cd = params["compute_dtype"]

    B, d_in_x = x.shape
    assert d_in_x == d_in, "input feature dim mismatch"
    out_dtype = x.dtype
    d_in_p, hidden_p = w1_p.shape
    d_out_p = w2_p.shape[1]

    c_item = jnp.dtype(cd).itemsize
    o_item = jnp.dtype(out_dtype).itemsize
    sublane = _sublane_min(cd)

    vmem_cap = _vmem_capacity_bytes()
    budget = int(vmem_cap * 0.7)  # headroom for compiler-internal scratch

    def row_tiling(target_rows):
        # Balanced row tiles: don't round B up to a full multiple of block_rows.
        B_su = _round_up(B, sublane)
        t = max(sublane, min(_round_up(target_rows, sublane), B_su))
        n = -(-B_su // t)
        bm_ = _round_up(-(-B_su // n), sublane)
        return bm_, n, bm_ * n

    weight_bytes = ((w1_p.size + w2_p.size) * c_item
                    + (b1_p.size + b2_p.size) * 4)
    f32_out = jnp.dtype(out_dtype) == jnp.dtype(jnp.float32)

    resident = (not force_streamed) and weight_bytes <= budget // 4

    if resident:
        # ---- fast path: weights DMA'd once and kept resident in VMEM ----
        def vmem_est(bm_):
            return (2 * weight_bytes                      # (possibly) double-buffered weights
                    + 2 * c_item * bm_ * d_in_p           # x tile, double buffered
                    + 2 * o_item * bm_ * d_out_p          # out tile, double buffered
                    + 4 * bm_ * (hidden_p + d_out_p))     # f32 intermediates (h, y)

        bm, n_rows, B_p = row_tiling(block_rows)
        while vmem_est(bm) > budget and bm > sublane:
            bm, n_rows, B_p = row_tiling(max(sublane, bm // 2))
        tk_h, n_k = hidden_p, 1
        est = vmem_est(bm)
    else:
        # ---- streamed path: tile the hidden reduction axis ----
        m = hidden_p // 128
        tk_cands = sorted({128 * d for d in range(1, m + 1) if m % d == 0},
                          reverse=True)  # multiples of 128 that divide hidden_p
        pref = [t for t in tk_cands if t <= max(128, block_hidden)]
        tk_h = pref[0] if pref else tk_cands[-1]

        def vmem_est(bm_, tk_):
            est_ = 2 * c_item * (bm_ * d_in_p + d_in_p * tk_ + tk_ * d_out_p)
            est_ += 2 * 4 * (tk_ + d_out_p)          # f32 bias tiles
            est_ += 2 * o_item * bm_ * d_out_p       # out tile, double buffered
            est_ += 4 * bm_ * (tk_ + d_out_p)        # f32 intermediates
            if not f32_out:
                est_ += 4 * bm_ * d_out_p            # f32 acc scratch
            return est_

        bm, n_rows, B_p = row_tiling(block_rows)
        while vmem_est(bm, tk_h) > budget:
            smaller = [t for t in tk_cands if t < tk_h]
            if smaller:
                tk_h = smaller[0]                    # shrink hidden tile first
            elif bm > sublane:
                bm, n_rows, B_p = row_tiling(max(sublane, bm // 2))
            else:
                break  # TODO(synk): tile d_in/d_out too for extreme widths
        n_k = hidden_p // tk_h
        est = vmem_est(bm, tk_h)

    # v7x megacore: ensure >=2 row tiles when the batch is big enough so the
    # "parallel" axis actually shards across both TensorCores.
    if n_rows == 1 and bm >= 2 * max(sublane, 128):
        bm, n_rows, B_p = row_tiling(bm // 2)

    vmem_limit = int(min(0.9 * vmem_cap, max(32 * 1024 * 1024, 1.25 * est)))

    # Pad / cast x (only the per-call activation, weights were padded at init).
    x_c = x.astype(cd)
    if (B_p, d_in_p) != (B, d_in):
        x_c = jnp.pad(x_c, ((0, B_p - B), (0, d_in_p - d_in)))

    # Advisory cost estimate (weight reads counted per actual streaming scheme).
    flops = 2 * B_p * d_in_p * hidden_p + 2 * B_p * hidden_p * d_out_p
    w_reads = 1 if resident else n_rows
    bytes_accessed = (B_p * d_in_p * c_item + B_p * d_out_p * o_item
                      + w_reads * weight_bytes)
    cost = pl.CostEstimate(flops=flops, transcendentals=0,
                           bytes_accessed=bytes_accessed)

    if resident:
        out_p = pl.pallas_call(
            mlp_kernel_resident,
            out_shape=jax.ShapeDtypeStruct((B_p, d_out_p), out_dtype),
            grid_spec=pltpu.PrefetchScalarGridSpec(
                num_scalar_prefetch=0,
                grid=(n_rows,),
                in_specs=[
                    pl.BlockSpec((bm, d_in_p), lambda i: (i, 0)),        # x rows
                    pl.BlockSpec((d_in_p, hidden_p), lambda i: (0, 0)),  # W1 (resident)
                    pl.BlockSpec((1, hidden_p), lambda i: (0, 0)),       # b1 (resident)
                    pl.BlockSpec((hidden_p, d_out_p), lambda i: (0, 0)), # W2 (resident)
                    pl.BlockSpec((1, d_out_p), lambda i: (0, 0)),        # b2 (resident)
                ],
                out_specs=pl.BlockSpec((bm, d_out_p), lambda i: (i, 0)),
            ),
            compiler_params=pltpu.CompilerParams(
                dimension_semantics=("parallel",),
                vmem_limit_bytes=vmem_limit,
            ),
            cost_estimate=cost,
        )(x_c, w1_p, b1_p, w2_p, b2_p)
    else:
        if f32_out:
            kernel = mlp_kernel_streamed_f32acc
            scratch = ()
        else:
            kernel = mlp_kernel_streamed_scratch
            scratch = [pltpu.VMEM((bm, d_out_p), jnp.float32)]

        out_p = pl.pallas_call(
            kernel,
            out_shape=jax.ShapeDtypeStruct((B_p, d_out_p), out_dtype),
            grid_spec=pltpu.PrefetchScalarGridSpec(
                num_scalar_prefetch=0,
                grid=(n_rows, n_k),
                in_specs=[
                    pl.BlockSpec((bm, d_in_p), lambda i, k: (i, 0)),     # x rows
                    pl.BlockSpec((d_in_p, tk_h), lambda i, k: (0, k)),   # W1 hidden tile
                    pl.BlockSpec((1, tk_h), lambda i, k: (0, k)),        # b1 hidden tile
                    pl.BlockSpec((tk_h, d_out_p), lambda i, k: (k, 0)),  # W2 hidden tile
                    pl.BlockSpec((1, d_out_p), lambda i, k: (0, 0)),     # b2
                ],
                out_specs=pl.BlockSpec((bm, d_out_p), lambda i, k: (i, 0)),
                scratch_shapes=scratch,
            ),
            compiler_params=pltpu.CompilerParams(
                dimension_semantics=("parallel", "arbitrary"),
                vmem_limit_bytes=vmem_limit,
            ),
            cost_estimate=cost,
        )(x_c, w1_p, b1_p, w2_p, b2_p)

    if (B_p, d_out_p) != (B, d_out):
        out_p = out_p[:B, :d_out]
    return out_p


def init_mlp_params(key, input_dim, hidden_dim, output_dim, dtype=jnp.float32):
    """Deterministic init mimicking torch.nn.Linear's U(-1/sqrt(fan_in), ...)."""
    k1, k2, k3, k4 = jax.random.split(key, 4)
    bound1 = 1.0 / (input_dim ** 0.5)
    bound2 = 1.0 / (hidden_dim ** 0.5)
    # Stored as (in, out) so the kernel can do x @ W directly.
    w1 = jax.random.uniform(k1, (input_dim, hidden_dim), dtype, -bound1, bound1)
    b1 = jax.random.uniform(k2, (hidden_dim,), dtype, -bound1, bound1)
    w2 = jax.random.uniform(k3, (hidden_dim, output_dim), dtype, -bound2, bound2)
    b2 = jax.random.uniform(k4, (output_dim,), dtype, -bound2, bound2)
    return w1, b1, w2, b2


if __name__ == "__main__":
    key = jax.random.PRNGKey(0)
    k_x, k_p = jax.random.split(key)

    # Small shapes consistent with the module: batch=8, in=32, hidden=64, out=16.
    batch, input_dim, hidden_dim, output_dim = 8, 32, 64, 16
    x = jax.random.normal(k_x, (batch, input_dim), dtype=jnp.float32)
    w1, b1, w2, b2 = init_mlp_params(k_p, input_dim, hidden_dim, output_dim)
    ref = jnp.maximum(x @ w1 + b1, 0.0) @ w2 + b2

    # 1) Resident-weight fast path, f32.
    params = prepare_mlp_params(w1, b1, w2, b2)
    out = jax.block_until_ready(mlp_forward(x, params))
    assert out.shape == (batch, output_dim)
    assert jnp.allclose(out, ref, atol=1e-5, rtol=1e-5)

    # 2) Streamed hidden-reduction path (forced), awkward non-aligned sizes, f32.
    batch2, in2, hid2, out2 = 200, 160, 320, 48
    x2 = jax.random.normal(k_x, (batch2, in2), dtype=jnp.float32)
    p2 = init_mlp_params(k_p, in2, hid2, out2)
    params2 = prepare_mlp_params(*p2)
    ref2 = jnp.maximum(x2 @ p2[0] + p2[1], 0.0) @ p2[2] + p2[3]
    out_s = jax.block_until_ready(
        mlp_forward(x2, params2, block_rows=64, block_hidden=128,
                    force_streamed=True))
    assert jnp.allclose(out_s, ref2, atol=1e-4, rtol=1e-4)

    # 3) bf16 compute path (f32 accumulation in-kernel), resident.
    params_bf16 = prepare_mlp_params(w1, b1, w2, b2, compute_dtype=jnp.bfloat16)
    out_bf = jax.block_until_ready(mlp_forward(x, params_bf16))
    assert jnp.allclose(out_bf, ref, atol=5e-2, rtol=5e-2)

    # 4) bf16 input + bf16 compute, streamed path with f32 scratch accumulator.
    params2_bf16 = prepare_mlp_params(*p2, compute_dtype=jnp.bfloat16)
    out_s_bf = jax.block_until_ready(
        mlp_forward(x2.astype(jnp.bfloat16), params2_bf16,
                    block_rows=64, block_hidden=128, force_streamed=True))
    assert jnp.allclose(out_s_bf.astype(jnp.float32), ref2, atol=5e-2, rtol=5e-2)

    print("KERNEL_OK")
</pallas_src>

<mosaic_0001>
module attributes {stable_mosaic.version = 11 : i64} {
  func.func @mlp_kernel_resident(%arg0: i32, %arg1: memref<8x128xf32, #tpu.memory_space<vmem>>, %arg2: memref<128x128xf32, #tpu.memory_space<vmem>>, %arg3: memref<1x128xf32, #tpu.memory_space<vmem>>, %arg4: memref<128x128xf32, #tpu.memory_space<vmem>>, %arg5: memref<1x128xf32, #tpu.memory_space<vmem>>, %arg6: memref<8x128xf32, #tpu.memory_space<vmem>>) attributes {dimension_semantics = [#tpu.dimension_semantics<parallel>], iteration_bounds = array<i64: 1>, scalar_prefetch = 0 : i64, scratch_operands = 0 : i64, tpu.core_type = #tpu.core_type<tc>, window_params = [{transform_indices = @transform_0, window_bounds = array<i64: 8, 128>}, {pipeline_mode = #tpu.pipeline_mode<synchronous>, transform_indices = @transform_1, window_bounds = array<i64: 128, 128>}, {pipeline_mode = #tpu.pipeline_mode<synchronous>, transform_indices = @transform_2, window_bounds = array<i64: 1, 128>}, {pipeline_mode = #tpu.pipeline_mode<synchronous>, transform_indices = @transform_3, window_bounds = array<i64: 128, 128>}, {pipeline_mode = #tpu.pipeline_mode<synchronous>, transform_indices = @transform_4, window_bounds = array<i64: 1, 128>}, {transform_indices = @transform_5, window_bounds = array<i64: 8, 128>}]} {
    %c0 = arith.constant 0 : index
    %c0_0 = arith.constant 0 : index
    %0 = vector.load %arg1[%c0, %c0_0] : memref<8x128xf32, #tpu.memory_space<vmem>>, vector<8x128xf32>
    %c0_1 = arith.constant 0 : index
    %c0_2 = arith.constant 0 : index
    %1 = vector.load %arg2[%c0_1, %c0_2] : memref<128x128xf32, #tpu.memory_space<vmem>>, vector<128x128xf32>
    %cst = arith.constant dense<0.000000e+00> : vector<8x128xf32>
    %2 = tpu.matmul %0, %1, %cst {dimension_numbers = #tpu.dot_dimension_numbers<[1], [0], [0], [1], [0, 0, 1, 1], [], []>} : vector<8x128xf32>, vector<128x128xf32>, vector<8x128xf32> -> vector<8x128xf32>
    %c0_3 = arith.constant 0 : index
    %c0_4 = arith.constant 0 : index
    %3 = vector.load %arg3[%c0_3, %c0_4] : memref<1x128xf32, #tpu.memory_space<vmem>>, vector<1x128xf32>
    %4 = vector.broadcast %3 : vector<1x128xf32> to vector<8x128xf32>
    %5 = arith.addf %2, %4 : vector<8x128xf32>
    %cst_5 = arith.constant 0.000000e+00 : f32
    %6 = vector.broadcast %cst_5 : f32 to vector<8x128xf32>
    %7 = arith.maximumf %5, %6 : vector<8x128xf32>
    %c0_6 = arith.constant 0 : index
    %c0_7 = arith.constant 0 : index
    %8 = vector.load %arg4[%c0_6, %c0_7] : memref<128x128xf32, #tpu.memory_space<vmem>>, vector<128x128xf32>
    %cst_8 = arith.constant dense<0.000000e+00> : vector<8x128xf32>
    %9 = tpu.matmul %7, %8, %cst_8 {dimension_numbers = #tpu.dot_dimension_numbers<[1], [0], [0], [1], [0, 0, 1, 1], [], []>} : vector<8x128xf32>, vector<128x128xf32>, vector<8x128xf32> -> vector<8x128xf32>
    %c0_9 = arith.constant 0 : index
    %c0_10 = arith.constant 0 : index
    %10 = vector.load %arg5[%c0_9, %c0_10] : memref<1x128xf32, #tpu.memory_space<vmem>>, vector<1x128xf32>
    %11 = vector.broadcast %10 : vector<1x128xf32> to vector<8x128xf32>
    %12 = arith.addf %9, %11 : vector<8x128xf32>
    %c0_11 = arith.constant 0 : index
    %c0_12 = arith.constant 0 : index
    %13 = vector.load %arg6[%c0_11, %c0_12] : memref<8x128xf32, #tpu.memory_space<vmem>>, vector<8x128xf32>
    tpu.vector_store %arg6[%c0_11, %c0_12], %12 {strides = array<i32>} : memref<8x128xf32, #tpu.memory_space<vmem>>, vector<8x128xf32>,
    return
  }
  func.func @transform_0(%arg0: i32) -> (i32, i32) {
    %c0_i32 = arith.constant 0 : i32
    %c0_i32_0 = arith.constant 0 : i32
    return %arg0, %c0_i32 : i32, i32
  }
  func.func @transform_1(%arg0: i32) -> (i32, i32) {
    %c0_i32 = arith.constant 0 : i32
    %c0_i32_0 = arith.constant 0 : i32
    %c0_i32_1 = arith.constant 0 : i32
    return %c0_i32, %c0_i32_0 : i32, i32
  }
  func.func @transform_2(%arg0: i32) -> (i32, i32) {
    %c0_i32 = arith.constant 0 : i32
    %c0_i32_0 = arith.constant 0 : i32
    %c0_i32_1 = arith.constant 0 : i32
    return %c0_i32, %c0_i32_0 : i32, i32
  }
  func.func @transform_3(%arg0: i32) -> (i32, i32) {
    %c0_i32 = arith.constant 0 : i32
    %c0_i32_0 = arith.constant 0 : i32
    %c0_i32_1 = arith.constant 0 : i32
    return %c0_i32, %c0_i32_0 : i32, i32
  }
  func.func @transform_4(%arg0: i32) -> (i32, i32) {
    %c0_i32 = arith.constant 0 : i32
    %c0_i32_0 = arith.constant 0 : i32
    %c0_i32_1 = arith.constant 0 : i32
    return %c0_i32, %c0_i32_0 : i32, i32
  }
  func.func @transform_5(%arg0: i32) -> (i32, i32) {
    %c0_i32 = arith.constant 0 : i32
    %c0_i32_0 = arith.constant 0 : i32
    return %arg0, %c0_i32 : i32, i32
  }
}

</mosaic_0001>

<llo_original>
// kernel: tpu_custom_call.1
$region0: #{tpu_custom_call.1}
  #allocation0 [shape = 'u32[]', space=smem, size = 0x4, offset = 0x4, fixed_abs, tag = 'smem constant byte address 0x4 - core index']
  #allocation1 [shape = 'u32[72,128]{1,0:T(1,128)}', space=vmem, size = 0x9000, scoped, tag = 'internal scratch']
  %s0 = inlined_call_operand.hbm [shape: f32[8,128], index: 0, kind: input, shape index: {}]
  %s1 = inlined_call_operand.hbm [shape: f32[128,128], index: 1, kind: input, shape index: {}]
  %s2 = inlined_call_operand.vmem [shape: f32[1,128], index: 2, kind: input, shape index: {}]
  %s3 = inlined_call_operand.hbm [shape: f32[128,128], index: 3, kind: input, shape index: {}]
  %s4 = inlined_call_operand.vmem [shape: f32[1,128], index: 4, kind: input, shape index: {}]
  %s5 = inlined_call_operand.hbm [shape: f32[8,128], index: 5, kind: output, shape index: {}]
  %s6 = sld [smem:[#allocation0]]
  $region42: #{tpu_custom_call.1} parent=0
    _
  %s8 = ssub.s32 1, %s6
  %s9 = scalar_select 0, %s8, %s6
  $region1: #{tpu_custom_call.1} parent=0
    #allocation2 [shape = 'u8[4096]{0}', space=vmem, size = 0x1000, scoped, tag = 'input window, operand 0, single buffered']
    #allocation3 [shape = 's32[1]{0}', space=sflag, size = 0x4, scoped, tag = 'scoped memory for tpu_custom_call.1']
    #allocation4 [shape = 's32[1]{0}', space=sflag, size = 0x4, scoped, tag = 'scoped memory for tpu_custom_call.1']
    #allocation5 [shape = 'u8[65536]{0}', space=vmem, size = 0x10000, scoped, tag = 'input window, operand 1, single buffered']
    #allocation6 [shape = 's32[1]{0}', space=sflag, size = 0x4, scoped, tag = 'scoped memory for tpu_custom_call.1']
    #allocation7 [shape = 'u8[65536]{0}', space=vmem, size = 0x10000, scoped, tag = 'input window, operand 3, single buffered']
    #allocation8 [shape = 'u8[4096]{0}', space=vmem, size = 0x1000, scoped, tag = 'output window, operand 0, single buffered']
    %10 = vsyncpa [#allocation3], 0
    %11 = vsyncpa [#allocation6], 0
    %12 = vsyncpa [#allocation4], 0
    // Predicated region
    $region2: #{tpu_custom_call.1} parent=1 // pred_check
      _
    $region3: #{tpu_custom_call.1} parent=1 // pred_check_branch
      %14 = sbr.rel (0) target = $region5
    $region4: #{tpu_custom_call.1} parent=1 // pred_region
      %16 = vsyncadd [#allocation3], 0
      %s18 = sshll.u32 %s0, 4
      %s19 = int_to_ptr.hbm [resolvable:$true] %s18
      %s20 = sshll.u32 [#allocation2], 4
      %s21 = int_to_ptr.vmem [resolvable:$true] %s20
      %23 = dma.hbm_to_vmem [thread:$0]  %s19, 128, %s21, [#allocation3]
    $region5: #{tpu_custom_call.1} parent=1 // pred_fallthru
      _
    // Predicated region
    $region6: #{tpu_custom_call.1} parent=1 // pred_check
      _
    $region7: #{tpu_custom_call.1} parent=1 // pred_check_branch
      %25 = sbr.rel (0) target = $region9
    $region8: #{tpu_custom_call.1} parent=1 // pred_region
      %27 = vsyncadd [#allocation6], 0
      %s28 = sshll.u32 %s1, 4
      %s29 = int_to_ptr.hbm [resolvable:$true] %s28
      %s30 = sshll.u32 [#allocation5], 4
      %s31 = int_to_ptr.vmem [resolvable:$true] %s30
      %36 = dma.hbm_to_vmem [thread:$0]  %s29, 2048, %s31, [#allocation6], 128, 128, 8
    $region9: #{tpu_custom_call.1} parent=1 // pred_fallthru
      _
    // Predicated region
    $region10: #{tpu_custom_call.1} parent=1 // pred_check
      _
    $region11: #{tpu_custom_call.1} parent=1 // pred_check_branch
      %38 = sbr.rel (0) target = $region13
    $region12: #{tpu_custom_call.1} parent=1 // pred_region
      _
    $region13: #{tpu_custom_call.1} parent=1 // pred_fallthru
      _
    // Predicated region
    $region14: #{tpu_custom_call.1} parent=1 // pred_check
      _
    $region15: #{tpu_custom_call.1} parent=1 // pred_check_branch
      %40 = sbr.rel (0) target = $region17
    $region16: #{tpu_custom_call.1} parent=1 // pred_region
      %42 = vsyncadd [#allocation6], 0
      %s43 = sshll.u32 %s3, 4
      %s44 = int_to_ptr.hbm [resolvable:$true] %s43
      %s45 = sshll.u32 [#allocation7], 4
      %s46 = int_to_ptr.vmem [resolvable:$true] %s45
      %51 = dma.hbm_to_vmem [thread:$0]  %s44, 2048, %s46, [#allocation6], 128, 128, 8
    $region17: #{tpu_custom_call.1} parent=1 // pred_fallthru
      _
    // Predicated region
    $region18: #{tpu_custom_call.1} parent=1 // pred_check
      _
    $region19: #{tpu_custom_call.1} parent=1 // pred_check_branch
      %53 = sbr.rel (0) target = $region21
    $region20: #{tpu_custom_call.1} parent=1 // pred_region
      _
    $region21: #{tpu_custom_call.1} parent=1 // pred_fallthru
      _
    // Predicated region
    $region22: #{tpu_custom_call.1} parent=1 // pred_check
      _
    $region23: #{tpu_custom_call.1} parent=1 // pred_check_branch
      %55 = sbr.rel (0) target = $region25
    $region24: #{tpu_custom_call.1} parent=1 // pred_region
      %57 = dma.done [#allocation3], 128
    $region25: #{tpu_custom_call.1} parent=1 // pred_fallthru
      _
    // Predicated region
    $region26: #{tpu_custom_call.1} parent=1 // pred_check
      _
    $region27: #{tpu_custom_call.1} parent=1 // pred_check_branch
      %59 = sbr.rel (0) target = $region29
    $region28: #{tpu_custom_call.1} parent=1 // pred_region
      %61 = dma.done [#allocation6], 2048
    $region29: #{tpu_custom_call.1} parent=1 // pred_fallthru
      _
    // Predicated region
    $region30: #{tpu_custom_call.1} parent=1 // pred_check
      _
    $region31: #{tpu_custom_call.1} parent=1 // pred_check_branch
      %63 = sbr.rel (0) target = $region33
    $region32: #{tpu_custom_call.1} parent=1 // pred_region
      %65 = dma.done [#allocation6], 2048
    $region33: #{tpu_custom_call.1} parent=1 // pred_fallthru
      _
    %v66 = vld [vmem:[#allocation2] sm:$0xff]
    %v67 = vld [vmem:[#allocation5] sm:$0xff]
    %v68 = vld [vmem:[#allocation5 + $0x8] sm:$0xff]
    %v69 = vld [vmem:[#allocation5 + $0x10] sm:$0xff]
    %v70 = vld [vmem:[#allocation5 + $0x18] sm:$0xff]
    %v71 = vld [vmem:[#allocation5 + $0x20] sm:$0xff]
    %v72 = vld [vmem:[#allocation5 + $0x28] sm:$0xff]
    %v73 = vld [vmem:[#allocation5 + $0x30] sm:$0xff]
    %v74 = vld [vmem:[#allocation5 + $0x38] sm:$0xff]
    %v75 = vld [vmem:[#allocation5 + $0x40] sm:$0xff]
    %v76 = vld [vmem:[#allocation5 + $0x48] sm:$0xff]
    %v77 = vld [vmem:[#allocation5 + $0x50] sm:$0xff]
    %v78 = vld [vmem:[#allocation5 + $0x58] sm:$0xff]
    %v79 = vld [vmem:[#allocation5 + $0x60] sm:$0xff]
    %v80 = vld [vmem:[#allocation5 + $0x68] sm:$0xff]
    %v81 = vld [vmem:[#allocation5 + $0x70] sm:$0xff]
    %v82 = vld [vmem:[#allocation5 + $0x78] sm:$0xff]
    %v83 = vld [vmem:[%s2] sm:$0x1]
    %v85 = vperm.slane %v83, 0
    %87 = vmatpush.msra.mxu0 %v82
    %88 = vmatpush.msra.mxu0 %v81
    %89 = vmatpush.msra.mxu0 %v80
    %90 = vmatpush.msra.mxu0 %v79
    %91 = vmatpush.msra.mxu0 %v78
    %92 = vmatpush.msra.mxu0 %v77
    %93 = vmatpush.msra.mxu0 %v76
    %94 = vmatpush.msra.mxu0 %v75
    %95 = vmatpush.msra.mxu0 %v74
    %96 = vmatpush.msra.mxu0 %v73
    %97 = vmatpush.msra.mxu0 %v72
    %98 = vmatpush.msra.mxu0 %v71
    %99 = vmatpush.msra.mxu0 %v70
    %100 = vmatpush.msra.mxu0 %v69
    %101 = vmatpush.msra.mxu0 %v68
    %102 = vmatpush.msra.mxu0 %v67
    %103 = vmatmul.f32.gmra.mxu0 %v66
    %v104 = vpop.f32.mrf.mxu0
    %v105 = vadd.f32 %v85, %v104
    %106 = vdwg.mxu0
    %v107 = vmax.f32 %v105, 0.0
    %v108 = vld [vmem:[#allocation7] sm:$0xff]
    %v109 = vld [vmem:[#allocation7 + $0x8] sm:$0xff]
    %v110 = vld [vmem:[#allocation7 + $0x10] sm:$0xff]
    %v111 = vld [vmem:[#allocation7 + $0x18] sm:$0xff]
    %v112 = vld [vmem:[#allocation7 + $0x20] sm:$0xff]
    %v113 = vld [vmem:[#allocation7 + $0x28] sm:$0xff]
    %v114 = vld [vmem:[#allocation7 + $0x30] sm:$0xff]
    %v115 = vld [vmem:[#allocation7 + $0x38] sm:$0xff]
    %v116 = vld [vmem:[#allocation7 + $0x40] sm:$0xff]
    %v117 = vld [vmem:[#allocation7 + $0x48] sm:$0xff]
    %v118 = vld [vmem:[#allocation7 + $0x50] sm:$0xff]
    %v119 = vld [vmem:[#allocation7 + $0x58] sm:$0xff]
    %v120 = vld [vmem:[#allocation7 + $0x60] sm:$0xff]
    %v121 = vld [vmem:[#allocation7 + $0x68] sm:$0xff]
    %v122 = vld [vmem:[#allocation7 + $0x70] sm:$0xff]
    %v123 = vld [vmem:[#allocation7 + $0x78] sm:$0xff]
    %v124 = vld [vmem:[%s4] sm:$0x1]
    %v126 = vperm.slane %v124, 0
    %128 = vmatpush.msra.mxu0 %v123
    %129 = vmatpush.msra.mxu0 %v122
    %130 = vmatpush.msra.mxu0 %v121
    %131 = vmatpush.msra.mxu0 %v120
    %132 = vmatpush.msra.mxu0 %v119
    %133 = vmatpush.msra.mxu0 %v118
    %134 = vmatpush.msra.mxu0 %v117
    %135 = vmatpush.msra.mxu0 %v116
    %136 = vmatpush.msra.mxu0 %v115
    %137 = vmatpush.msra.mxu0 %v114
    %138 = vmatpush.msra.mxu0 %v113
    %139 = vmatpush.msra.mxu0 %v112
    %140 = vmatpush.msra.mxu0 %v111
    %141 = vmatpush.msra.mxu0 %v110
    %142 = vmatpush.msra.mxu0 %v109
    %143 = vmatpush.msra.mxu0 %v108
    %144 = vmatmul.f32.gmra.mxu0 %v107
    %v145 = vpop.f32.mrf.mxu0
    %v146 = vadd.f32 %v126, %v145
    %147 = vdwg.mxu0
    %148 = vst [vmem:[#allocation8] sm:$0xff] %v146
    // Predicated region
    $region34: #{tpu_custom_call.1} parent=1 // pred_check
      _
    $region35: #{tpu_custom_call.1} parent=1 // pred_check_branch
      %150 = sbr.rel (0) target = $region37
    $region36: #{tpu_custom_call.1} parent=1 // pred_region
      %152 = vsyncadd [#allocation4], 0
      %s154 = sshll.u32 [#allocation8], 4
      %s155 = int_to_ptr.vmem [resolvable:$true] %s154
      %s156 = sshll.u32 %s5, 4
      %s157 = int_to_ptr.hbm [resolvable:$true] %s156
      %159 = dma.vmem_to_hbm [thread:$0]  %s155, 128, %s157, [#allocation4]
    $region37: #{tpu_custom_call.1} parent=1 // pred_fallthru
      _
    // Predicated region
    $region38: #{tpu_custom_call.1} parent=1 // pred_check
      _
    $region39: #{tpu_custom_call.1} parent=1 // pred_check_branch
      %161 = sbr.rel (0) target = $region41
    $region40: #{tpu_custom_call.1} parent=1 // pred_region
      %163 = dma.done [#allocation4], 128
    $region41: #{tpu_custom_call.1} parent=1 // pred_fallthru
      _
    %164 = vsyncpa [#allocation3], 1
    %165 = vsyncpa [#allocation6], 1
    %166 = vsyncpa [#allocation4], 1

</llo_original>
